<compile_context>
chip_gen: v5e
topology: v5e:2x2
jax: 0.10.0
libtpu: 0.0.40
codegen_flags: <defaults>
</compile_context>

<pallas_src>
import numpy as np

import jax
import jax.numpy as jnp
from jax.experimental import pallas as pl
from jax.experimental.pallas import tpu as pltpu

_CLIP_LO = 1e-8
_CLIP_HI = 1.0 - 1e-8


def _pg_bulk_kernel(x_ref, out_ref, acc_ref):
    """Accumulate sum(-log1p(-clip(x))) over the tiles of one row-slice.

    Grid: (num_slices [parallel], tiles_per_slice [arbitrary/reduction]).
    acc_ref: VMEM f32 scratch with the same shape as the input block (elementwise
    accumulation only; the single cross-lane reduce happens at the last step).
    """
    j = pl.program_id(1)

    @pl.when(j == 0)
    def _():
        acc_ref[...] = jnp.zeros_like(acc_ref)

    # Cast to f32 *after* the load (inputs may arrive as bf16); clamp like torch.clamp.
    p = jnp.clip(x_ref[...].astype(jnp.float32), _CLIP_LO, _CLIP_HI)
    # Bulk term (target == 0 everywhere): -log(1 - p).  Pure VPU/EUP, no per-step XLU.
    acc_ref[...] += -jnp.log1p(-p)

    @pl.when(j == pl.num_programs(1) - 1)
    def _():
        out_ref[0, 0, 0] = jnp.sum(acc_ref[...])


def pg_loss(src, tgt, *, lanes=512, block_rows=512, num_slices=2):
    """src: (B, V) probabilities in [0, 1] (any float dtype).
    tgt: list (len B) of lists of token ids that are 1.0 in the multi-hot target.
    Returns the scalar mean BCE, matching the PyTorch PG_Loss.forward semantics.
    """
    B, V = src.shape
    total = B * V

    # ---- static python glue: deduped hot-position indices -----------------------------
    hot_rows, hot_cols = [], []
    for i, token_list in enumerate(tgt):
        for token_id in sorted(set(int(t) for t in token_list)):
            hot_rows.append(i)
            hot_cols.append(token_id)

    # ---- lay (B, V) out as a sublane/lane-dense 2-D slab -------------------------------
    C = lanes                                   # lane dim: large multiple of 128
    n_rows = -(-total // C)
    n_rows = -(-n_rows // 8) * 8                # sublane dim: multiple of 8
    block_r = max(8, (min(block_rows, n_rows) // 8) * 8)
    tiles = -(-n_rows // block_r)
    tiles = -(-tiles // num_slices) * num_slices
    tiles_per_slice = tiles // num_slices
    rows_padded = tiles * block_r
    n_pad = rows_padded * C - total

    flat = jnp.ravel(src)                       # native dtype, no wrapper upcast
    if n_pad:
        flat = jnp.pad(flat, (0, n_pad))        # zero padding (corrected analytically)
    x2d = flat.reshape(rows_padded, C)

    partials = pl.pallas_call(
        _pg_bulk_kernel,
        out_shape=jax.ShapeDtypeStruct((num_slices, 1, 1), jnp.float32),
        grid_spec=pltpu.PrefetchScalarGridSpec(
            num_scalar_prefetch=0,
            grid=(num_slices, tiles_per_slice),
            in_specs=[
                pl.BlockSpec((block_r, C),
                             lambda s, j: (s * tiles_per_slice + j, 0)),
            ],
            out_specs=pl.BlockSpec((1, 1, 1), lambda s, j: (s, 0, 0),
                                   memory_space=pltpu.SMEM),
            scratch_shapes=[pltpu.VMEM((block_r, C), jnp.float32)],
        ),
        compiler_params=pltpu.CompilerParams(
            dimension_semantics=("parallel", "arbitrary"),
            vmem_limit_bytes=32 * 1024 * 1024,
        ),
    )(x2d)

    bulk = jnp.sum(partials)
    # Padded elements are 0.0 -> clipped to 1e-8; subtract their exact known contribution.
    bulk = bulk - jnp.float32(n_pad) * (-jnp.log1p(-jnp.float32(_CLIP_LO)))

    # Sparse correction for hot positions: they should contribute -log(p), not -log(1-p).
    # TODO(synk): for very large hot sets this gather could move in-kernel via scalar prefetch.
    if hot_rows:
        r = jnp.asarray(np.asarray(hot_rows, dtype=np.int32))
        c = jnp.asarray(np.asarray(hot_cols, dtype=np.int32))
        p_hot = jnp.clip(src[r, c].astype(jnp.float32), _CLIP_LO, _CLIP_HI)
        bulk = bulk + jnp.sum(-jnp.log(p_hot) + jnp.log1p(-p_hot))

    return bulk / jnp.float32(total)


def pg_loss_reference(src, tgt):
    """Direct JAX translation of the PyTorch module (dense targets, mean BCE)."""
    B, V = src.shape
    t = np.zeros((B, V), dtype=np.float32)
    for i, token_list in enumerate(tgt):
        for token_id in token_list:
            t[i, token_id] = 1.0
    t = jnp.asarray(t)
    p = jnp.clip(src.astype(jnp.float32), _CLIP_LO, _CLIP_HI)
    return jnp.mean(-(t * jnp.log(p) + (1.0 - t) * jnp.log1p(-p)))


if __name__ == "__main__":
    key = jax.random.PRNGKey(0)
    batch_size, vocab_size = 2, 1024

    # src in [0, 1] (e.g. post-sigmoid probabilities)
    src = jax.random.uniform(key, (batch_size, vocab_size), dtype=jnp.float32)

    # tgt: list-of-lists of indices that should be 1.0 per row
    tgt = [[4, 9], [0, 100, 200, 777]]

    loss = jax.block_until_ready(pg_loss(src, tgt))
    ref = jax.block_until_ready(pg_loss_reference(src, tgt))

    assert jnp.isfinite(loss), "kernel produced non-finite loss"
    assert abs(float(loss) - float(ref)) < 1e-4, (float(loss), float(ref))
    print("KERNEL_OK")
</pallas_src>

<mosaic_0001>
module attributes {stable_mosaic.version = 11 : i64} {
  func.func @_pg_bulk_kernel(%arg0: i32, %arg1: i32, %arg2: memref<8x512xf32, #tpu.memory_space<vmem>>, %arg3: memref<1x1x1xf32, #tpu.memory_space<smem>>, %arg4: memref<8x512xf32, #tpu.memory_space<vmem>>) attributes {dimension_semantics = [#tpu.dimension_semantics<parallel>, #tpu.dimension_semantics<arbitrary>], iteration_bounds = array<i64: 2, 1>, scalar_prefetch = 0 : i64, scratch_operands = 1 : i64, tpu.core_type = #tpu.core_type<tc>, window_params = [{transform_indices = @transform_0, window_bounds = array<i64: 8, 512>}, {transform_indices = @transform_1, window_bounds = array<i64: 1, 1, 1>}]} {
    %c0_i32 = arith.constant 0 : i32
    %0 = arith.cmpi eq, %arg1, %c0_i32 : i32
    %1 = arith.extui %0 : i1 to i32
    %c0_i32_0 = arith.constant 0 : i32
    %2 = arith.cmpi ne, %1, %c0_i32_0 : i32
    scf.if %2 {
      %cst_11 = arith.constant 0.000000e+00 : f32
      %19 = vector.broadcast %cst_11 : f32 to vector<8x512xf32>
      %c0_12 = arith.constant 0 : index
      %c0_13 = arith.constant 0 : index
      %20 = vector.load %arg4[%c0_12, %c0_13] : memref<8x512xf32, #tpu.memory_space<vmem>>, vector<8x512xf32>
      tpu.vector_store %arg4[%c0_12, %c0_13], %19 {strides = array<i32>} : memref<8x512xf32, #tpu.memory_space<vmem>>, vector<8x512xf32>,
    } else {
    }
    %c0 = arith.constant 0 : index
    %c0_1 = arith.constant 0 : index
    %3 = vector.load %arg2[%c0, %c0_1] : memref<8x512xf32, #tpu.memory_space<vmem>>, vector<8x512xf32>
    %cst = arith.constant 9.99999993E-9 : f32
    %cst_2 = arith.constant 1.000000e+00 : f32
    %4 = vector.broadcast %cst : f32 to vector<8x512xf32>
    %5 = arith.maximumf %4, %3 : vector<8x512xf32>
    %6 = vector.broadcast %cst_2 : f32 to vector<8x512xf32>
    %7 = arith.minimumf %6, %5 : vector<8x512xf32>
    %c0_3 = arith.constant 0 : index
    %c0_4 = arith.constant 0 : index
    %8 = vector.load %arg4[%c0_3, %c0_4] : memref<8x512xf32, #tpu.memory_space<vmem>>, vector<8x512xf32>
    %cst_5 = arith.constant 0.000000e+00 : f32
    %9 = vector.broadcast %cst_5 : f32 to vector<8x512xf32>
    %10 = arith.subf %9, %7 : vector<8x512xf32>
    %11 = math.log1p %10 : vector<8x512xf32>
    %cst_6 = arith.constant 0.000000e+00 : f32
    %12 = vector.broadcast %cst_6 : f32 to vector<8x512xf32>
    %13 = arith.subf %12, %11 : vector<8x512xf32>
    %14 = arith.addf %8, %13 : vector<8x512xf32>
    %c0_7 = arith.constant 0 : index
    %c0_8 = arith.constant 0 : index
    %15 = vector.load %arg4[%c0_7, %c0_8] : memref<8x512xf32, #tpu.memory_space<vmem>>, vector<8x512xf32>
    tpu.vector_store %arg4[%c0_7, %c0_8], %14 {strides = array<i32>} : memref<8x512xf32, #tpu.memory_space<vmem>>, vector<8x512xf32>,
    %c0_i32_9 = arith.constant 0 : i32
    %16 = arith.cmpi eq, %arg1, %c0_i32_9 : i32
    %17 = arith.extui %16 : i1 to i32
    %c0_i32_10 = arith.constant 0 : i32
    %18 = arith.cmpi ne, %17, %c0_i32_10 : i32
    scf.if %18 {
      %c0_11 = arith.constant 0 : index
      %c0_12 = arith.constant 0 : index
      %19 = vector.load %arg4[%c0_11, %c0_12] : memref<8x512xf32, #tpu.memory_space<vmem>>, vector<8x512xf32>
      %20 = vector.shape_cast %19 : vector<8x512xf32> to vector<1x8x512xf32>
      %cst_13 = arith.constant dense<0.000000e+00> : vector<1xf32>
      %21 = vector.multi_reduction <add>, %20, %cst_13 [1, 2] : vector<1x8x512xf32> to vector<1xf32>
      %22 = vector.shape_cast %21 : vector<1xf32> to vector<1x1x1xf32>
      %23 = vector.extract %22[0, 0, 0] : f32 from vector<1x1x1xf32>
      %c0_14 = arith.constant 0 : index
      %c0_15 = arith.constant 0 : index
      %c0_16 = arith.constant 0 : index
      %24 = memref.load %arg3[%c0_14, %c0_15, %c0_16] : memref<1x1x1xf32, #tpu.memory_space<smem>>
      memref.store %23, %arg3[%c0_14, %c0_15, %c0_16] : memref<1x1x1xf32, #tpu.memory_space<smem>>
    } else {
    }
    return
  }
  func.func @transform_0(%arg0: i32, %arg1: i32) -> (i32, i32) {
    %c1_i32 = arith.constant 1 : i32
    %0 = arith.muli %arg0, %c1_i32 : i32
    %1 = arith.addi %0, %arg1 : i32
    %c0_i32 = arith.constant 0 : i32
    %c0_i32_0 = arith.constant 0 : i32
    return %1, %c0_i32 : i32, i32
  }
  func.func @transform_1(%arg0: i32, %arg1: i32) -> (i32, i32, i32) {
    %c0_i32 = arith.constant 0 : i32
    %c0_i32_0 = arith.constant 0 : i32
    %c0_i32_1 = arith.constant 0 : i32
    return %arg0, %c0_i32, %c0_i32_0 : i32, i32, i32
  }
}

</mosaic_0001>

<llo_original>
// kernel: tpu_custom_call.1
$region0: #{tpu_custom_call.1}
  #allocation0 [shape = 'u32[]', space=smem, size = 0x4, offset = 0x4, fixed_abs, tag = 'smem constant byte address 0x4 - core index']
  #allocation1 [shape = 'u32[72,128]{1,0:T(1,128)}', space=vmem, size = 0x9000, scoped, tag = 'internal scratch']
  #allocation2 [shape = 'f32[8,512]{1,0:T(8,128)}', space=vmem, size = 0x4000, scoped, tag = 'scratch operand']
  %s0 = inlined_call_operand.hbm [shape: f32[16,512], index: 0, kind: input, shape index: {}]
  %s1 = inlined_call_operand.vmem [shape: f32[2,1,1], index: 1, kind: output, shape index: {}]
  %s2 = sld [smem:[#allocation0]]
  $region49: #{tpu_custom_call.1} parent=0
    _
  %s4 = ssub.s32 1, %s2
  %s5 = scalar_select 0, %s4, %s2
  $region1: #{tpu_custom_call.1} parent=0
    #allocation3 [shape = 'u8[32768]{0}', space=vmem, size = 0x8000, scoped, tag = 'input window, operand 0']
    #allocation4 [shape = 's32[2]{0}', space=sflag, size = 0x8, scoped, tag = 'scoped memory for tpu_custom_call.1']
    #allocation5 [shape = 's32[2]{0}', space=sflag, size = 0x8, scoped, tag = 'scoped memory for tpu_custom_call.1']
    #allocation6 [shape = 'u8[1024]{0}', space=smem, size = 0x400, scoped, tag = 'output window, operand 0']
    %6 = vsyncpa [#allocation4], 0
    %s7 = scalar_lea.sflag [#allocation4], 1
    %8 = vsyncpa %s7, 0
    %9 = vsyncpa [#allocation5], 0
    %s10 = scalar_lea.sflag [#allocation5], 1
    %11 = vsyncpa %s10, 0
    loop: start=0, step=1, limit=4
    $region2: #{tpu_custom_call.1} parent=1 // loop_pre_header
      _
    $region3: #{tpu_custom_call.1} parent=1 // loop_header
      %s13 = sphi 0, %s17
      %p14 = scmp.ge.s32.totalorder %s13, 4
      %s20 = sphi 0, %s32
      %s21 = sphi 0, %s28
      %s22 = sphi 0, %s20
      %s23 = sphi 0, %s21
      %s24 = sphi 0, %s22
      %s25 = sphi 0, %s23
      %s37 = sphi 0, %s39
      %s40 = sphi 0, %s37
      %s41 = sphi 0, %s40
      %s57 = sphi 0, %s41
      %s63 = sphi 0, %s65
      %s66 = sphi 0, %s63
      %s67 = sphi 0, %s66
      %s83 = sphi 0, %s67
    $region4: #{tpu_custom_call.1} parent=1 // loop_header_branch
      %16 = sbr.rel (%p14) target = $region8
    $region5: #{tpu_custom_call.1} parent=1 // loop_body
      %s18 = ssub.s32 %s13, 1
      %s19 = ssub.s32 %s13, 2
      %s26 = sadd.s32 1, %s21
      %p27 = scmp.ge.s32.totalorder %s26, 1
      %s28 = scalar_select %p27, 0, %s26
      %s29 = sadd.s32 1, %s20
      %s30 = scalar_select %p27, %s29, %s20
      %p31 = scmp.ge.s32.totalorder %s30, 2
      %s32 = scalar_select %p31, 0, %s30
      %s33 = sadd.s32 %s20, %s21
      %s34 = sadd.s32 %s32, %s28
      %s35 = ssub.s32 %s33, %s34
      %p36 = scmp.eq.s32.totalorder %s35, 0
      %s38 = sadd.s32 %s37, 1
      %s39 = scalar_select %p36, %s37, %s38
      %p42 = pneg %p36
      %p43 = scmp.eq.s32.totalorder %s13, 1
      %p44 = por %p42, %p43
      %p45 = scmp.ne.s32.totalorder %s37, %s40
      %p46 = scmp.eq.s32.totalorder %s13, 0
      %p47 = por %p45, %p46
      %p48 = scmp.ne.s32.totalorder %s37, %s40
      %p49 = scmp.eq.s32.totalorder %s18, 1
      %p50 = por %p48, %p49
      %p51 = scmp.ne.s32.totalorder %s40, %s41
      %p52 = scmp.eq.s32.totalorder %s18, 0
      %p53 = por %p51, %p52
      %p54 = scmp.ne.s32.totalorder %s40, %s41
      %p55 = scmp.eq.s32.totalorder %s19, 1
      %p56 = por %p54, %p55
      %p58 = scmp.ne.s32.totalorder %s41, %s57
      %p59 = scmp.eq.s32.totalorder %s19, 0
      %p60 = por %p58, %p59
      %s61 = ssub.s32 %s20, %s32
      %p62 = scmp.eq.s32.totalorder %s61, 0
      %s64 = sadd.s32 %s63, 1
      %s65 = scalar_select %p62, %s63, %s64
      %p68 = pneg %p62
      %p69 = scmp.eq.s32.totalorder %s13, 1
      %p70 = por %p68, %p69
      %p71 = scmp.ne.s32.totalorder %s63, %s66
      %p72 = scmp.eq.s32.totalorder %s13, 0
      %p73 = por %p71, %p72
      %p74 = scmp.ne.s32.totalorder %s63, %s66
      %p75 = scmp.eq.s32.totalorder %s18, 1
      %p76 = por %p74, %p75
      %p77 = scmp.ne.s32.totalorder %s66, %s67
      %p78 = scmp.eq.s32.totalorder %s18, 0
      %p79 = por %p77, %p78
      %p80 = scmp.ne.s32.totalorder %s66, %s67
      %p81 = scmp.eq.s32.totalorder %s19, 1
      %p82 = por %p80, %p81
      %p84 = scmp.ne.s32.totalorder %s67, %s83
      %p85 = scmp.eq.s32.totalorder %s19, 0
      %p86 = por %p84, %p85
      %p87 = scmp.le.s32.totalorder 1, %s13
      %p88 = scmp.lt.s32.totalorder %s13, 3
      %p89 = pnand %p87, %p88
      %p90 = pneg %p89
      // Predicated region
      $region9: #{tpu_custom_call.1} parent=5 // pred_check
        _
      $region10: #{tpu_custom_call.1} parent=5 // pred_check_branch
        %92 = sbr.rel (%p89) target = $region12
      $region11: #{tpu_custom_call.1} parent=5 // pred_region
        %s93 = ssub.s32 %s13, 1
      $region12: #{tpu_custom_call.1} parent=5 // pred_fallthru
        _
      %p94 = scmp.lt.s32.totalorder %s13, 2
      // Predicated region
      $region13: #{tpu_custom_call.1} parent=5 // pred_check
        %p95 = pneg %p94
      $region14: #{tpu_custom_call.1} parent=5 // pred_check_branch
        %97 = sbr.rel (%p95) target = $region16
      $region15: #{tpu_custom_call.1} parent=5 // pred_region
        // Predicated region
        $region17: #{tpu_custom_call.1} parent=15 // pred_check
          %p98 = pneg %p47
        $region18: #{tpu_custom_call.1} parent=15 // pred_check_branch
          %100 = sbr.rel (%p98) target = $region20
        $region19: #{tpu_custom_call.1} parent=15 // pred_region
          %s101 = sand.u32 %s37, 1
          %s102 = scalar_lea.sflag [#allocation4], %s101
          %s103 = sand.u32 %s37, 1
          %s104 = smul.addr %s103, 32
          %s105 = scalar_lea.vmem [#allocation3], %s104
          %s106 = sadd.s32 %s20, %s21
          %108 = vsyncadd %s102, 0
          %s109 = smul.addr %s106, 4
          %s110 = smul.addr %s109, 8
          %s111 = scalar_lea.hbm %s0, %s110
          %s113 = sshll.u32 %s111, 4
          %s114 = int_to_ptr.hbm [resolvable:$true] %s113
          %s115 = sshll.u32 %s105, 4
          %s116 = int_to_ptr.vmem [resolvable:$true] %s115
          %118 = dma.hbm_to_vmem [thread:$0]  %s114, 512, %s116, %s102
        $region20: #{tpu_custom_call.1} parent=15 // pred_fallthru
          _
      $region16: #{tpu_custom_call.1} parent=5 // pred_fallthru
        _
      %p119 = scmp.le.s32.totalorder 1, %s13
      %p120 = scmp.lt.s32.totalorder %s13, 3
      %p121 = pnand %p119, %p120
      %p122 = pneg %p121
      // Predicated region
      $region21: #{tpu_custom_call.1} parent=5 // pred_check
        _
      $region22: #{tpu_custom_call.1} parent=5 // pred_check_branch
        %124 = sbr.rel (%p121) target = $region24
      $region23: #{tpu_custom_call.1} parent=5 // pred_region
        %s125 = ssub.s32 %s13, 1
        %s126 = sand.u32 %s40, 1
        %s127 = scalar_lea.sflag [#allocation4], %s126
        %s128 = sand.u32 %s40, 1
        %s129 = smul.addr %s128, 32
        %s130 = scalar_lea.vmem [#allocation3], %s129
        // Predicated region
        $region25: #{tpu_custom_call.1} parent=23 // pred_check
          %p131 = pneg %p53
        $region26: #{tpu_custom_call.1} parent=23 // pred_check_branch
          %133 = sbr.rel (%p131) target = $region28
        $region27: #{tpu_custom_call.1} parent=23 // pred_region
          %135 = dma.done %s127, 512
        $region28: #{tpu_custom_call.1} parent=23 // pred_fallthru
          _
        %s136 = sand.u32 %s40, 1
        %s137 = scalar_lea.sflag [#allocation4], %s136
        %s138 = sand.u32 %s40, 1
        %s139 = smul.addr %s138, 32
        %s140 = scalar_lea.vmem [#allocation3], %s139
        %p141 = pneg %p53
        %p142 = pneg %p50
        %p143 = pneg %p79
        %p144 = pneg %p76
        %s145 = sand.u32 %s66, 1
        %s146 = scalar_lea.sflag [#allocation5], %s145
        %s147 = sand.u32 %s66, 1
        %s148 = smul.addr %s147, 128
        %s149 = scalar_lea.smem [#allocation6], %s148
        %s150 = sadd.s32 %s22, %s23
        %p151 = scmp.eq.s32.totalorder %s23, 0
        // Predicated region
        $region29: #{tpu_custom_call.1} parent=23 // pred_check
          %p152 = pneg %p151
        $region30: #{tpu_custom_call.1} parent=23 // pred_check_branch
          %154 = sbr.rel (%p152) target = $region32
        $region31: #{tpu_custom_call.1} parent=23 // pred_region
          %155 = vst [vmem:[#allocation2] sm:$0xff] 0.0
          %156 = vst [vmem:[#allocation2 + $0x8] sm:$0xff] 0.0
          %157 = vst [vmem:[#allocation2 + $0x10] sm:$0xff] 0.0
          %158 = vst [vmem:[#allocation2 + $0x18] sm:$0xff] 0.0
        $region32: #{tpu_custom_call.1} parent=23 // pred_fallthru
          _
        %v159 = vld [vmem:[%s130] sm:$0xff]
        %v160 = vld [vmem:[%s130 + $0x8] sm:$0xff]
        %v161 = vld [vmem:[%s130 + $0x10] sm:$0xff]
        %v162 = vld [vmem:[%s130 + $0x18] sm:$0xff]
        %v163 = vmax.f32 %v159, 1e-08
        %v164 = vmax.f32 %v160, 1e-08
        %v165 = vmax.f32 %v161, 1e-08
        %v166 = vmax.f32 %v162, 1e-08
        %v167 = vmin.f32 %v163, 1.0
        %v168 = vmin.f32 %v164, 1.0
        %v169 = vmin.f32 %v165, 1.0
        %v170 = vmin.f32 %v166, 1.0
        %v171 = vld [vmem:[#allocation2] sm:$0xff]
        %v172 = vld [vmem:[#allocation2 + $0x8] sm:$0xff]
        %v173 = vld [vmem:[#allocation2 + $0x10] sm:$0xff]
        %v174 = vld [vmem:[#allocation2 + $0x18] sm:$0xff]
        %v175 = vsub.f32 0.0, %v167
        %v176 = vsub.f32 0.0, %v168
        %v177 = vsub.f32 0.0, %v169
        %v178 = vsub.f32 0.0, %v170
        %v179 = vadd.f32 %v175, 1.0
        %v180 = vlog2.pop %v179
        %v181 = vmul.f32 %v180, 0.6931472
        %v182 = vmul.f32 -0.5, %v175
        %v183 = vadd.f32 %v182, 1.0
        %v184 = vmul.f32 %v183, %v175
        %v185 = vand.u32 2147483647, %v175
        %vm186 = vcmp.lt.f32.partialorder %v185, 0.0004427343
        %v187 = vsel %vm186, %v184, %v181
        %v188 = vadd.f32 %v176, 1.0
        %v189 = vlog2.pop %v188
        %v190 = vmul.f32 %v189, 0.6931472
        %v191 = vmul.f32 -0.5, %v176
        %v192 = vadd.f32 %v191, 1.0
        %v193 = vmul.f32 %v192, %v176
        %v194 = vand.u32 2147483647, %v176
        %vm195 = vcmp.lt.f32.partialorder %v194, 0.0004427343
        %v196 = vsel %vm195, %v193, %v190
        %v197 = vadd.f32 %v177, 1.0
        %v198 = vlog2.pop %v197
        %v199 = vmul.f32 %v198, 0.6931472
        %v200 = vmul.f32 -0.5, %v177
        %v201 = vadd.f32 %v200, 1.0
        %v202 = vmul.f32 %v201, %v177
        %v203 = vand.u32 2147483647, %v177
        %vm204 = vcmp.lt.f32.partialorder %v203, 0.0004427343
        %v205 = vsel %vm204, %v202, %v199
        %v206 = vadd.f32 %v178, 1.0
        %v207 = vlog2.pop %v206
        %v208 = vmul.f32 %v207, 0.6931472
        %v209 = vmul.f32 -0.5, %v178
        %v210 = vadd.f32 %v209, 1.0
        %v211 = vmul.f32 %v210, %v178
        %v212 = vand.u32 2147483647, %v178
        %vm213 = vcmp.lt.f32.partialorder %v212, 0.0004427343
        %v214 = vsel %vm213, %v211, %v208
        %v215 = vsub.f32 0.0, %v187
        %v216 = vsub.f32 0.0, %v196
        %v217 = vsub.f32 0.0, %v205
        %v218 = vsub.f32 0.0, %v214
        %v219 = vadd.f32 %v171, %v215
        %v220 = vadd.f32 %v172, %v216
        %v221 = vadd.f32 %v173, %v217
        %v222 = vadd.f32 %v174, %v218
        %223 = vst [vmem:[#allocation2] sm:$0xff] %v219
        %224 = vst [vmem:[#allocation2 + $0x8] sm:$0xff] %v220
        %225 = vst [vmem:[#allocation2 + $0x10] sm:$0xff] %v221
        %226 = vst [vmem:[#allocation2 + $0x18] sm:$0xff] %v222
        // Predicated region
        $region33: #{tpu_custom_call.1} parent=23 // pred_check
          %p227 = pneg %p151
        $region34: #{tpu_custom_call.1} parent=23 // pred_check_branch
          %229 = sbr.rel (%p227) target = $region36
        $region35: #{tpu_custom_call.1} parent=23 // pred_region
          %v230 = vld [vmem:[#allocation2] sm:$0xff]
          %v231 = vld [vmem:[#allocation2 + $0x8] sm:$0xff]
          %v232 = vld [vmem:[#allocation2 + $0x10] sm:$0xff]
          %v233 = vld [vmem:[#allocation2 + $0x18] sm:$0xff]
          %v234 = vadd.f32 %v230, %v231
          %v235 = vadd.f32 %v234, %v232
          %v236 = vadd.f32 %v235, %v233
          %237 = vadd.xlane.f32.xlu0 %v236
          %v238 = vpop.xlane.xlu0 %237
          %v239 = vrot.slane %v238, 4
          %v240 = vadd.f32 %v238, %v239
          %v241 = vrot.slane %v240, 2
          %v242 = vadd.f32 %v240, %v241
          %v243 = vrot.slane %v242, 1
          %v244 = vadd.f32 %v242, %v243
          %s245 = vtos %v244
          %s246 = scalar_lea.smem %s149, 0 [#allocation6]
          %247 = sst [smem:[%s246]] %s245
        $region36: #{tpu_custom_call.1} parent=23 // pred_fallthru
          _
        %s248 = sand.u32 %s66, 1
        %s249 = scalar_lea.sflag [#allocation5], %s248
        %s250 = sand.u32 %s66, 1
        %s251 = smul.addr %s250, 128
        %s252 = scalar_lea.smem [#allocation6], %s251
        // Predicated region
        $region37: #{tpu_custom_call.1} parent=23 // pred_check
          %p253 = pneg %p76
        $region38: #{tpu_custom_call.1} parent=23 // pred_check_branch
          %255 = sbr.rel (%p253) target = $region40
        $region39: #{tpu_custom_call.1} parent=23 // pred_region
          %257 = vsyncadd %s249, 0
          %s258 = scalar_lea.vmem %s1, %s22
          %s260 = sshll.u32 %s258, 4
          %s261 = int_to_ptr.vmem [resolvable:$true] %s260
          %263 = dma.smem_to_vmem %s252, 16, %s261, %s249
        $region40: #{tpu_custom_call.1} parent=23 // pred_fallthru
          _
      $region24: #{tpu_custom_call.1} parent=5 // pred_fallthru
        _
      %p264 = scmp.le.s32.totalorder 2, %s13
      // Predicated region
      $region41: #{tpu_custom_call.1} parent=5 // pred_check
        %p265 = pneg %p264
      $region42: #{tpu_custom_call.1} parent=5 // pred_check_branch
        %267 = sbr.rel (%p265) target = $region44
      $region43: #{tpu_custom_call.1} parent=5 // pred_region
        %s268 = ssub.s32 %s13, 2
        // Predicated region
        $region45: #{tpu_custom_call.1} parent=43 // pred_check
          %p269 = pneg %p82
        $region46: #{tpu_custom_call.1} parent=43 // pred_check_branch
          %271 = sbr.rel (%p269) target = $region48
        $region47: #{tpu_custom_call.1} parent=43 // pred_region
          %s272 = sand.u32 %s67, 1
          %s273 = scalar_lea.sflag [#allocation5], %s272
          %s274 = sand.u32 %s67, 1
          %s275 = smul.addr %s274, 128
          %s276 = scalar_lea.smem [#allocation6], %s275
          %278 = dma.done %s273, 16
        $region48: #{tpu_custom_call.1} parent=43 // pred_fallthru
          _
        %279 = sfence
      $region44: #{tpu_custom_call.1} parent=5 // pred_fallthru
        _
    $region6: #{tpu_custom_call.1} parent=1 // loop_footer
      %s17 = sadd.s32 1, %s13
    $region7: #{tpu_custom_call.1} parent=1 // loop_footer_branch
      %12 = sbr.rel target = $region3
    $region8: #{tpu_custom_call.1} parent=1 // loop_exit
      _
    %280 = vsyncpa [#allocation4], 1
    %s281 = scalar_lea.sflag [#allocation4], 1
    %282 = vsyncpa %s281, 1
    %283 = vsyncpa [#allocation5], 1
    %s284 = scalar_lea.sflag [#allocation5], 1
    %285 = vsyncpa %s284, 1

</llo_original>
